<compile_context>
chip_gen: v5e
topology: v5e:2x2
jax: 0.10.0
libtpu: 0.0.40
codegen_flags: <defaults>
</compile_context>

<pallas_src>
import math

import jax
import jax.numpy as jnp
from jax.experimental import pallas as pl
from jax.experimental.pallas import tpu as pltpu


def _erf(x):
    # Abramowitz & Stegun 7.1.26 rational approximation (|err| < 1.5e-7).
    a1, a2, a3, a4, a5 = (0.254829592, -0.284496736, 1.421413741,
                          -1.453152027, 1.061405429)
    p = 0.3275911
    z = jnp.abs(x)
    t = 1.0 / (1.0 + p * z)
    poly = ((((a5 * t + a4) * t + a3) * t + a2) * t + a1) * t
    y = 1.0 - poly * jnp.exp(-z * z)
    return jnp.where(x >= 0, y, -y)


def _gelu_exact(x):
    # torch.nn.GELU() default = exact (erf-based) GELU
    return 0.5 * x * (1.0 + _erf(x * 0.7071067811865476))


def make_enhanced_lstm_kernel(T, H):
    """One batch-tile: full LSTM recurrence + output MLP + residual."""

    def kernel(x_ref, h0_ref, c0_ref, wih_ref, whh_ref, b_ref,
               w1_ref, b1_ref, w2_ref, b2_ref,
               out_ref, hN_ref, cN_ref):
        # x_ref/out_ref: (T, B, I) time-major;  h0/c0/hN/cN: (B, H)
        # wih: (I, 4H)  whh: (H, 4H)  b: (1, 4H)
        # w1: (H, H)  b1: (1, H)  w2: (H, I)  b2: (1, I)

        def step(t, carry):
            h, c = carry
            x_t = x_ref[t]                                            # (B, I)
            g = (jnp.dot(x_t, wih_ref[...], preferred_element_type=jnp.float32)
                 + jnp.dot(h, whh_ref[...], preferred_element_type=jnp.float32)
                 + b_ref[...])                                        # (B, 4H)
            # PyTorch gate order: input, forget, cell, output
            i_g = jax.nn.sigmoid(g[:, 0 * H:1 * H])
            f_g = jax.nn.sigmoid(g[:, 1 * H:2 * H])
            g_g = jnp.tanh(g[:, 2 * H:3 * H])
            o_g = jax.nn.sigmoid(g[:, 3 * H:4 * H])
            c = f_g * c + i_g * g_g
            h = o_g * jnp.tanh(c)

            # fused output head: Linear -> GELU -> Linear, + residual.
            # TODO(synk): nn.Dropout(p=0.12) omitted — eval/inference semantics.
            z = _gelu_exact(
                jnp.dot(h, w1_ref[...], preferred_element_type=jnp.float32)
                + b1_ref[...])
            y = (jnp.dot(z, w2_ref[...], preferred_element_type=jnp.float32)
                 + b2_ref[...])
            out_ref[t] = y + x_t
            return (h, c)

        h_fin, c_fin = jax.lax.fori_loop(0, T, step,
                                         (h0_ref[...], c0_ref[...]))
        hN_ref[...] = h_fin
        cN_ref[...] = c_fin

    return kernel


def enhanced_lstm_forward(x, w_ih, w_hh, b_ih, b_hh, w1, b1, w2, b2,
                          hidden=None):
    """x: (N, T, I) float32  ->  (output (N, T, I), (h_n, c_n) each (1, N, H)).

    Mirrors EnhancedLSTM.forward in eval mode (num_layers == 1).
    """
    N, T, I = x.shape
    H = w_hh.shape[1]
    # TODO(synk): num_layers > 1 stacked LSTM not implemented (module default is 1).

    if hidden is None:
        h0 = jnp.zeros((N, H), jnp.float32)
        c0 = jnp.zeros((N, H), jnp.float32)
    else:
        h0 = hidden[0][0].astype(jnp.float32)
        c0 = hidden[1][0].astype(jnp.float32)

    # one-time host-side weight/layout prep
    x_tm = jnp.transpose(x, (1, 0, 2)).astype(jnp.float32)          # (T, N, I)
    wih_t = jnp.transpose(w_ih).astype(jnp.float32)                 # (I, 4H)
    whh_t = jnp.transpose(w_hh).astype(jnp.float32)                 # (H, 4H)
    b = (b_ih + b_hh).reshape(1, 4 * H).astype(jnp.float32)
    w1_t = jnp.transpose(w1).astype(jnp.float32)                    # (H, H)
    b1_2 = b1.reshape(1, H).astype(jnp.float32)
    w2_t = jnp.transpose(w2).astype(jnp.float32)                    # (H, I)
    b2_2 = b2.reshape(1, I).astype(jnp.float32)

    # batch tiling: whole batch per grid step for small N, 8-row tiles otherwise
    B_blk = 8 if (N % 8 == 0) else N
    grid = (N // B_blk,)

    out_tm, hN, cN = pl.pallas_call(
        make_enhanced_lstm_kernel(T, H),
        out_shape=(jax.ShapeDtypeStruct((T, N, I), jnp.float32),
                   jax.ShapeDtypeStruct((N, H), jnp.float32),
                   jax.ShapeDtypeStruct((N, H), jnp.float32)),
        grid_spec=pltpu.PrefetchScalarGridSpec(
            num_scalar_prefetch=0,
            grid=grid,
            in_specs=[
                pl.BlockSpec((T, B_blk, I), lambda b: (0, b, 0)),   # x (time-major)
                pl.BlockSpec((B_blk, H), lambda b: (b, 0)),         # h0
                pl.BlockSpec((B_blk, H), lambda b: (b, 0)),         # c0
                pl.BlockSpec((I, 4 * H), lambda b: (0, 0)),         # W_ih^T
                pl.BlockSpec((H, 4 * H), lambda b: (0, 0)),         # W_hh^T
                pl.BlockSpec((1, 4 * H), lambda b: (0, 0)),         # b_ih + b_hh
                pl.BlockSpec((H, H), lambda b: (0, 0)),             # W1^T
                pl.BlockSpec((1, H), lambda b: (0, 0)),             # b1
                pl.BlockSpec((H, I), lambda b: (0, 0)),             # W2^T
                pl.BlockSpec((1, I), lambda b: (0, 0)),             # b2
            ],
            out_specs=[
                pl.BlockSpec((T, B_blk, I), lambda b: (0, b, 0)),   # output
                pl.BlockSpec((B_blk, H), lambda b: (b, 0)),         # h_n
                pl.BlockSpec((B_blk, H), lambda b: (b, 0)),         # c_n
            ],
        ),
        compiler_params=pltpu.CompilerParams(
            dimension_semantics=("parallel",)),
    )(x_tm, h0, c0, wih_t, whh_t, b, w1_t, b1_2, w2_t, b2_2)

    out = jnp.transpose(out_tm, (1, 0, 2))                          # (N, T, I)

    # mirror the torch try/except + isfinite guard: zero everything if non-finite
    finite = jnp.all(jnp.isfinite(out))
    out = jnp.where(finite, out, jnp.zeros_like(out))
    hN = jnp.where(finite, hN, jnp.zeros_like(hN))
    cN = jnp.where(finite, cN, jnp.zeros_like(cN))
    return out, (hN[None], cN[None])


def reference(x, w_ih, w_hh, b_ih, b_hh, w1, b1, w2, b2):
    """Plain-JAX replica of the PyTorch forward (eval mode), for validation."""
    N, T, I = x.shape
    H = w_hh.shape[1]
    hp = jax.lax.Precision.HIGHEST

    def step(carry, x_t):
        h, c = carry
        g = (jnp.dot(x_t, w_ih.T, precision=hp)
             + jnp.dot(h, w_hh.T, precision=hp) + b_ih + b_hh)
        i_g = jax.nn.sigmoid(g[:, 0 * H:1 * H])
        f_g = jax.nn.sigmoid(g[:, 1 * H:2 * H])
        g_g = jnp.tanh(g[:, 2 * H:3 * H])
        o_g = jax.nn.sigmoid(g[:, 3 * H:4 * H])
        c = f_g * c + i_g * g_g
        h = o_g * jnp.tanh(c)
        return (h, c), h

    h0 = jnp.zeros((N, H), jnp.float32)
    c0 = jnp.zeros((N, H), jnp.float32)
    (hN, cN), hs = jax.lax.scan(step, (h0, c0), jnp.transpose(x, (1, 0, 2)))
    hs = jnp.transpose(hs, (1, 0, 2))                               # (N, T, H)
    z = jnp.einsum('nth,kh->ntk', hs, w1, precision=hp) + b1
    z = 0.5 * z * (1.0 + jax.scipy.special.erf(z * 0.7071067811865476))
    y = jnp.einsum('nth,ih->nti', z, w2, precision=hp) + b2 + x
    return y, hN, cN


if __name__ == "__main__":
    N, T, I, H = 2, 8, 16, 32      # batch, seq_len, input_size, hidden_size

    key = jax.random.PRNGKey(0)
    k = jax.random.split(key, 6)
    x = jax.random.normal(k[0], (N, T, I), jnp.float32)

    # deterministic init mimicking the module (orthogonal-ish weights,
    # forget-gate bias = 1, xavier-uniform head, zero head biases)
    w_ih = jax.random.normal(k[1], (4 * H, I), jnp.float32) / math.sqrt(I)
    w_hh = jax.random.normal(k[2], (4 * H, H), jnp.float32) / math.sqrt(H)
    b_ih = jnp.zeros((4 * H,), jnp.float32).at[H:2 * H].set(1.0)
    b_hh = jnp.zeros((4 * H,), jnp.float32).at[H:2 * H].set(1.0)
    bw1 = math.sqrt(6.0 / (H + H))
    w1 = jax.random.uniform(k[3], (H, H), jnp.float32, -bw1, bw1)
    b1 = jnp.zeros((H,), jnp.float32)
    bw2 = math.sqrt(6.0 / (H + I))
    w2 = jax.random.uniform(k[4], (I, H), jnp.float32, -bw2, bw2)
    b2 = jnp.zeros((I,), jnp.float32)

    out, (hN, cN) = enhanced_lstm_forward(x, w_ih, w_hh, b_ih, b_hh,
                                          w1, b1, w2, b2, hidden=None)
    out = jax.block_until_ready(out)
    assert out.shape == (N, T, I)
    assert hN.shape == (1, N, H) and cN.shape == (1, N, H)

    ref_out, ref_h, ref_c = reference(x, w_ih, w_hh, b_ih, b_hh, w1, b1, w2, b2)
    err_o = float(jnp.max(jnp.abs(out - ref_out)))
    err_h = float(jnp.max(jnp.abs(hN[0] - ref_h)))
    err_c = float(jnp.max(jnp.abs(cN[0] - ref_c)))
    assert err_o < 5e-4, f"output mismatch vs reference: {err_o}"
    assert err_h < 5e-4, f"h_n mismatch vs reference: {err_h}"
    assert err_c < 5e-4, f"c_n mismatch vs reference: {err_c}"

    print("KERNEL_OK")
</pallas_src>

<mosaic_0001>
module attributes {stable_mosaic.version = 11 : i64} {
  func.func @kernel(%arg0: i32, %arg1: memref<8x2x16xf32, #tpu.memory_space<vmem>>, %arg2: memref<2x32xf32, #tpu.memory_space<vmem>>, %arg3: memref<2x32xf32, #tpu.memory_space<vmem>>, %arg4: memref<16x128xf32, #tpu.memory_space<vmem>>, %arg5: memref<32x128xf32, #tpu.memory_space<vmem>>, %arg6: memref<1x128xf32, #tpu.memory_space<vmem>>, %arg7: memref<32x32xf32, #tpu.memory_space<vmem>>, %arg8: memref<1x32xf32, #tpu.memory_space<vmem>>, %arg9: memref<32x16xf32, #tpu.memory_space<vmem>>, %arg10: memref<1x16xf32, #tpu.memory_space<vmem>>, %arg11: memref<8x2x16xf32, #tpu.memory_space<vmem>>, %arg12: memref<2x32xf32, #tpu.memory_space<vmem>>, %arg13: memref<2x32xf32, #tpu.memory_space<vmem>>) attributes {dimension_semantics = [#tpu.dimension_semantics<parallel>], iteration_bounds = array<i64: 1>, scalar_prefetch = 0 : i64, scratch_operands = 0 : i64, tpu.core_type = #tpu.core_type<tc>, window_params = [{transform_indices = @transform_0, window_bounds = array<i64: 8, 2, 16>}, {transform_indices = @transform_1, window_bounds = array<i64: 2, 32>}, {transform_indices = @transform_2, window_bounds = array<i64: 2, 32>}, {pipeline_mode = #tpu.pipeline_mode<synchronous>, transform_indices = @transform_3, window_bounds = array<i64: 16, 128>}, {pipeline_mode = #tpu.pipeline_mode<synchronous>, transform_indices = @transform_4, window_bounds = array<i64: 32, 128>}, {pipeline_mode = #tpu.pipeline_mode<synchronous>, transform_indices = @transform_5, window_bounds = array<i64: 1, 128>}, {pipeline_mode = #tpu.pipeline_mode<synchronous>, transform_indices = @transform_6, window_bounds = array<i64: 32, 32>}, {pipeline_mode = #tpu.pipeline_mode<synchronous>, transform_indices = @transform_7, window_bounds = array<i64: 1, 32>}, {pipeline_mode = #tpu.pipeline_mode<synchronous>, transform_indices = @transform_8, window_bounds = array<i64: 32, 16>}, {pipeline_mode = #tpu.pipeline_mode<synchronous>, transform_indices = @transform_9, window_bounds = array<i64: 1, 16>}, {transform_indices = @transform_10, window_bounds = array<i64: 8, 2, 16>}, {transform_indices = @transform_11, window_bounds = array<i64: 2, 32>}, {transform_indices = @transform_12, window_bounds = array<i64: 2, 32>}]} {
    %c0 = arith.constant 0 : index
    %c0_0 = arith.constant 0 : index
    %0 = vector.load %arg2[%c0, %c0_0] : memref<2x32xf32, #tpu.memory_space<vmem>>, vector<2x32xf32>
    %c0_1 = arith.constant 0 : index
    %c0_2 = arith.constant 0 : index
    %1 = vector.load %arg3[%c0_1, %c0_2] : memref<2x32xf32, #tpu.memory_space<vmem>>, vector<2x32xf32>
    %c0_i32 = arith.constant 0 : i32
    %c8_i32 = arith.constant 8 : i32
    %2 = arith.addi %c0_i32, %c8_i32 : i32
    %c1_i32 = arith.constant 1 : i32
    %3:2 = scf.for %arg14 = %c0_i32 to %2 step %c1_i32 iter_args(%arg15 = %0, %arg16 = %1) -> (vector<2x32xf32>, vector<2x32xf32>)  : i32 {
      %6 = arith.index_cast %arg14 : i32 to index
      %c0_8 = arith.constant 0 : index
      %c0_9 = arith.constant 0 : index
      %7 = vector.load %arg1[%6, %c0_8, %c0_9] : memref<8x2x16xf32, #tpu.memory_space<vmem>>, vector<1x2x16xf32>
      %8 = vector.shape_cast %7 : vector<1x2x16xf32> to vector<2x16xf32>
      %c0_10 = arith.constant 0 : index
      %c0_11 = arith.constant 0 : index
      %9 = vector.load %arg4[%c0_10, %c0_11] : memref<16x128xf32, #tpu.memory_space<vmem>>, vector<16x128xf32>
      %cst = arith.constant dense<0.000000e+00> : vector<2x128xf32>
      %10 = tpu.matmul %8, %9, %cst {dimension_numbers = #tpu.dot_dimension_numbers<[1], [0], [0], [1], [0, 0, 1, 1], [], []>} : vector<2x16xf32>, vector<16x128xf32>, vector<2x128xf32> -> vector<2x128xf32>
      %c0_12 = arith.constant 0 : index
      %c0_13 = arith.constant 0 : index
      %11 = vector.load %arg5[%c0_12, %c0_13] : memref<32x128xf32, #tpu.memory_space<vmem>>, vector<32x128xf32>
      %cst_14 = arith.constant dense<0.000000e+00> : vector<2x128xf32>
      %12 = tpu.matmul %arg15, %11, %cst_14 {dimension_numbers = #tpu.dot_dimension_numbers<[1], [0], [0], [1], [0, 0, 1, 1], [], []>} : vector<2x32xf32>, vector<32x128xf32>, vector<2x128xf32> -> vector<2x128xf32>
      %13 = arith.addf %10, %12 : vector<2x128xf32>
      %c0_15 = arith.constant 0 : index
      %c0_16 = arith.constant 0 : index
      %14 = vector.load %arg6[%c0_15, %c0_16] : memref<1x128xf32, #tpu.memory_space<vmem>>, vector<1x128xf32>
      %15 = vector.broadcast %14 : vector<1x128xf32> to vector<2x128xf32>
      %16 = arith.addf %13, %15 : vector<2x128xf32>
      %17 = vector.extract_strided_slice %16 {offsets = [0, 0], sizes = [2, 32], strides = [1, 1]} : vector<2x128xf32> to vector<2x32xf32>
      %18 = arith.negf %17 : vector<2x32xf32>
      %19 = math.exp %18 : vector<2x32xf32>
      %cst_17 = arith.constant 1.000000e+00 : f32
      %20 = vector.broadcast %cst_17 : f32 to vector<2x32xf32>
      %21 = arith.addf %20, %19 : vector<2x32xf32>
      %22 = arith.divf %20, %21 : vector<2x32xf32>
      %23 = vector.extract_strided_slice %16 {offsets = [0, 32], sizes = [2, 32], strides = [1, 1]} : vector<2x128xf32> to vector<2x32xf32>
      %24 = arith.negf %23 : vector<2x32xf32>
      %25 = math.exp %24 : vector<2x32xf32>
      %cst_18 = arith.constant 1.000000e+00 : f32
      %26 = vector.broadcast %cst_18 : f32 to vector<2x32xf32>
      %27 = arith.addf %26, %25 : vector<2x32xf32>
      %28 = arith.divf %26, %27 : vector<2x32xf32>
      %29 = vector.extract_strided_slice %16 {offsets = [0, 64], sizes = [2, 32], strides = [1, 1]} : vector<2x128xf32> to vector<2x32xf32>
      %30 = math.tanh %29 : vector<2x32xf32>
      %31 = vector.extract_strided_slice %16 {offsets = [0, 96], sizes = [2, 32], strides = [1, 1]} : vector<2x128xf32> to vector<2x32xf32>
      %32 = arith.negf %31 : vector<2x32xf32>
      %33 = math.exp %32 : vector<2x32xf32>
      %cst_19 = arith.constant 1.000000e+00 : f32
      %34 = vector.broadcast %cst_19 : f32 to vector<2x32xf32>
      %35 = arith.addf %34, %33 : vector<2x32xf32>
      %36 = arith.divf %34, %35 : vector<2x32xf32>
      %37 = arith.mulf %28, %arg16 : vector<2x32xf32>
      %38 = arith.mulf %22, %30 : vector<2x32xf32>
      %39 = arith.addf %37, %38 : vector<2x32xf32>
      %40 = math.tanh %39 : vector<2x32xf32>
      %41 = arith.mulf %36, %40 : vector<2x32xf32>
      %c0_20 = arith.constant 0 : index
      %c0_21 = arith.constant 0 : index
      %42 = vector.load %arg7[%c0_20, %c0_21] : memref<32x32xf32, #tpu.memory_space<vmem>>, vector<32x32xf32>
      %cst_22 = arith.constant dense<0.000000e+00> : vector<2x32xf32>
      %43 = tpu.matmul %41, %42, %cst_22 {dimension_numbers = #tpu.dot_dimension_numbers<[1], [0], [0], [1], [0, 0, 1, 1], [], []>} : vector<2x32xf32>, vector<32x32xf32>, vector<2x32xf32> -> vector<2x32xf32>
      %c0_23 = arith.constant 0 : index
      %c0_24 = arith.constant 0 : index
      %44 = vector.load %arg8[%c0_23, %c0_24] : memref<1x32xf32, #tpu.memory_space<vmem>>, vector<1x32xf32>
      %45 = vector.broadcast %44 : vector<1x32xf32> to vector<2x32xf32>
      %46 = arith.addf %43, %45 : vector<2x32xf32>
      %cst_25 = arith.constant 5.000000e-01 : f32
      %47 = vector.broadcast %cst_25 : f32 to vector<2x32xf32>
      %48 = arith.mulf %47, %46 : vector<2x32xf32>
      %cst_26 = arith.constant 0.707106769 : f32
      %49 = vector.broadcast %cst_26 : f32 to vector<2x32xf32>
      %50 = arith.mulf %46, %49 : vector<2x32xf32>
      %51 = math.absf %50 : vector<2x32xf32>
      %cst_27 = arith.constant 0.327591091 : f32
      %52 = vector.broadcast %cst_27 : f32 to vector<2x32xf32>
      %53 = arith.mulf %52, %51 : vector<2x32xf32>
      %cst_28 = arith.constant 1.000000e+00 : f32
      %54 = vector.broadcast %cst_28 : f32 to vector<2x32xf32>
      %55 = arith.addf %54, %53 : vector<2x32xf32>
      %cst_29 = arith.constant 1.000000e+00 : f32
      %56 = vector.broadcast %cst_29 : f32 to vector<2x32xf32>
      %57 = arith.divf %56, %55 : vector<2x32xf32>
      %cst_30 = arith.constant 1.06140542 : f32
      %58 = vector.broadcast %cst_30 : f32 to vector<2x32xf32>
      %59 = arith.mulf %58, %57 : vector<2x32xf32>
      %cst_31 = arith.constant -1.45315206 : f32
      %60 = vector.broadcast %cst_31 : f32 to vector<2x32xf32>
      %61 = arith.addf %59, %60 : vector<2x32xf32>
      %62 = arith.mulf %61, %57 : vector<2x32xf32>
      %cst_32 = arith.constant 1.42141378 : f32
      %63 = vector.broadcast %cst_32 : f32 to vector<2x32xf32>
      %64 = arith.addf %62, %63 : vector<2x32xf32>
      %65 = arith.mulf %64, %57 : vector<2x32xf32>
      %cst_33 = arith.constant -0.284496725 : f32
      %66 = vector.broadcast %cst_33 : f32 to vector<2x32xf32>
      %67 = arith.addf %65, %66 : vector<2x32xf32>
      %68 = arith.mulf %67, %57 : vector<2x32xf32>
      %cst_34 = arith.constant 0.254829586 : f32
      %69 = vector.broadcast %cst_34 : f32 to vector<2x32xf32>
      %70 = arith.addf %68, %69 : vector<2x32xf32>
      %71 = arith.mulf %70, %57 : vector<2x32xf32>
      %cst_35 = arith.constant 0.000000e+00 : f32
      %72 = vector.broadcast %cst_35 : f32 to vector<2x32xf32>
      %73 = arith.subf %72, %51 : vector<2x32xf32>
      %74 = arith.mulf %73, %51 : vector<2x32xf32>
      %75 = math.exp %74 : vector<2x32xf32>
      %76 = arith.mulf %71, %75 : vector<2x32xf32>
      %cst_36 = arith.constant 1.000000e+00 : f32
      %77 = vector.broadcast %cst_36 : f32 to vector<2x32xf32>
      %78 = arith.subf %77, %76 : vector<2x32xf32>
      %cst_37 = arith.constant 0.000000e+00 : f32
      %79 = vector.broadcast %cst_37 : f32 to vector<2x32xf32>
      %80 = arith.cmpf oge, %50, %79 : vector<2x32xf32>
      %cst_38 = arith.constant 0.000000e+00 : f32
      %81 = vector.broadcast %cst_38 : f32 to vector<2x32xf32>
      %82 = arith.subf %81, %78 : vector<2x32xf32>
      %83 = arith.select %80, %78, %82 : vector<2x32xi1>, vector<2x32xf32>
      %cst_39 = arith.constant 1.000000e+00 : f32
      %84 = vector.broadcast %cst_39 : f32 to vector<2x32xf32>
      %85 = arith.addf %84, %83 : vector<2x32xf32>
      %86 = arith.mulf %48, %85 : vector<2x32xf32>
      %c0_40 = arith.constant 0 : index
      %c0_41 = arith.constant 0 : index
      %87 = vector.load %arg9[%c0_40, %c0_41] : memref<32x16xf32, #tpu.memory_space<vmem>>, vector<32x16xf32>
      %cst_42 = arith.constant dense<0.000000e+00> : vector<2x16xf32>
      %88 = tpu.matmul %86, %87, %cst_42 {dimension_numbers = #tpu.dot_dimension_numbers<[1], [0], [0], [1], [0, 0, 1, 1], [], []>} : vector<2x32xf32>, vector<32x16xf32>, vector<2x16xf32> -> vector<2x16xf32>
      %c0_43 = arith.constant 0 : index
      %c0_44 = arith.constant 0 : index
      %89 = vector.load %arg10[%c0_43, %c0_44] : memref<1x16xf32, #tpu.memory_space<vmem>>, vector<1x16xf32>
      %90 = vector.broadcast %89 : vector<1x16xf32> to vector<2x16xf32>
      %91 = arith.addf %88, %90 : vector<2x16xf32>
      %92 = arith.addf %91, %8 : vector<2x16xf32>
      %93 = arith.index_cast %arg14 : i32 to index
      %c0_45 = arith.constant 0 : index
      %c0_46 = arith.constant 0 : index
      %94 = vector.load %arg11[%93, %c0_45, %c0_46] : memref<8x2x16xf32, #tpu.memory_space<vmem>>, vector<1x2x16xf32>
      %95 = vector.shape_cast %94 : vector<1x2x16xf32> to vector<2x16xf32>
      %96 = vector.shape_cast %92 : vector<2x16xf32> to vector<1x2x16xf32>
      tpu.vector_store %arg11[%93, %c0_45, %c0_46], %96 {strides = array<i32>} : memref<8x2x16xf32, #tpu.memory_space<vmem>>, vector<1x2x16xf32>,
      scf.yield %41, %39 : vector<2x32xf32>, vector<2x32xf32>
    }
    %c8_i32_3 = arith.constant 8 : i32
    %c0_4 = arith.constant 0 : index
    %c0_5 = arith.constant 0 : index
    %4 = vector.load %arg12[%c0_4, %c0_5] : memref<2x32xf32, #tpu.memory_space<vmem>>, vector<2x32xf32>
    tpu.vector_store %arg12[%c0_4, %c0_5], %3#0 {strides = array<i32>} : memref<2x32xf32, #tpu.memory_space<vmem>>, vector<2x32xf32>,
    %c0_6 = arith.constant 0 : index
    %c0_7 = arith.constant 0 : index
    %5 = vector.load %arg13[%c0_6, %c0_7] : memref<2x32xf32, #tpu.memory_space<vmem>>, vector<2x32xf32>
    tpu.vector_store %arg13[%c0_6, %c0_7], %3#1 {strides = array<i32>} : memref<2x32xf32, #tpu.memory_space<vmem>>, vector<2x32xf32>,
    return
  }
  func.func @transform_0(%arg0: i32) -> (i32, i32, i32) {
    %c0_i32 = arith.constant 0 : i32
    %c0_i32_0 = arith.constant 0 : i32
    %c0_i32_1 = arith.constant 0 : i32
    return %c0_i32, %arg0, %c0_i32_0 : i32, i32, i32
  }
  func.func @transform_1(%arg0: i32) -> (i32, i32) {
    %c0_i32 = arith.constant 0 : i32
    %c0_i32_0 = arith.constant 0 : i32
    return %arg0, %c0_i32 : i32, i32
  }
  func.func @transform_2(%arg0: i32) -> (i32, i32) {
    %c0_i32 = arith.constant 0 : i32
    %c0_i32_0 = arith.constant 0 : i32
    return %arg0, %c0_i32 : i32, i32
  }
  func.func @transform_3(%arg0: i32) -> (i32, i32) {
    %c0_i32 = arith.constant 0 : i32
    %c0_i32_0 = arith.constant 0 : i32
    %c0_i32_1 = arith.constant 0 : i32
    return %c0_i32, %c0_i32_0 : i32, i32
  }
  func.func @transform_4(%arg0: i32) -> (i32, i32) {
    %c0_i32 = arith.constant 0 : i32
    %c0_i32_0 = arith.constant 0 : i32
    %c0_i32_1 = arith.constant 0 : i32
    return %c0_i32, %c0_i32_0 : i32, i32
  }
  func.func @transform_5(%arg0: i32) -> (i32, i32) {
    %c0_i32 = arith.constant 0 : i32
    %c0_i32_0 = arith.constant 0 : i32
    %c0_i32_1 = arith.constant 0 : i32
    return %c0_i32, %c0_i32_0 : i32, i32
  }
  func.func @transform_6(%arg0: i32) -> (i32, i32) {
    %c0_i32 = arith.constant 0 : i32
    %c0_i32_0 = arith.constant 0 : i32
    %c0_i32_1 = arith.constant 0 : i32
    return %c0_i32, %c0_i32_0 : i32, i32
  }
  func.func @transform_7(%arg0: i32) -> (i32, i32) {
    %c0_i32 = arith.constant 0 : i32
    %c0_i32_0 = arith.constant 0 : i32
    %c0_i32_1 = arith.constant 0 : i32
    return %c0_i32, %c0_i32_0 : i32, i32
  }
  func.func @transform_8(%arg0: i32) -> (i32, i32) {
    %c0_i32 = arith.constant 0 : i32
    %c0_i32_0 = arith.constant 0 : i32
    %c0_i32_1 = arith.constant 0 : i32
    return %c0_i32, %c0_i32_0 : i32, i32
  }
  func.func @transform_9(%arg0: i32) -> (i32, i32) {
    %c0_i32 = arith.constant 0 : i32
    %c0_i32_0 = arith.constant 0 : i32
    %c0_i32_1 = arith.constant 0 : i32
    return %c0_i32, %c0_i32_0 : i32, i32
  }
  func.func @transform_10(%arg0: i32) -> (i32, i32, i32) {
    %c0_i32 = arith.constant 0 : i32
    %c0_i32_0 = arith.constant 0 : i32
    %c0_i32_1 = arith.constant 0 : i32
    return %c0_i32, %arg0, %c0_i32_0 : i32, i32, i32
  }
  func.func @transform_11(%arg0: i32) -> (i32, i32) {
    %c0_i32 = arith.constant 0 : i32
    %c0_i32_0 = arith.constant 0 : i32
    return %arg0, %c0_i32 : i32, i32
  }
  func.func @transform_12(%arg0: i32) -> (i32, i32) {
    %c0_i32 = arith.constant 0 : i32
    %c0_i32_0 = arith.constant 0 : i32
    return %arg0, %c0_i32 : i32, i32
  }
}

</mosaic_0001>

<llo_original>
// kernel: tpu_custom_call.1
$region0: #{tpu_custom_call.1}
  #allocation0 [shape = 'u32[]', space=smem, size = 0x4, offset = 0x4, fixed_abs, tag = 'smem constant byte address 0x4 - core index']
  #allocation1 [shape = 'u32[72,128]{1,0:T(1,128)}', space=vmem, size = 0x9000, scoped, tag = 'internal scratch']
  %s0 = inlined_call_operand.vmem [shape: f32[8,2,16], index: 0, kind: input, shape index: {}]
  %s1 = inlined_call_operand.vmem [shape: f32[2,32], index: 1, kind: input, shape index: {}]
  %s2 = inlined_call_operand.hbm [shape: f32[2,32], index: 2, kind: input, shape index: {}]
  %s3 = inlined_call_operand.hbm [shape: f32[16,128], index: 3, kind: input, shape index: {}]
  %s4 = inlined_call_operand.vmem [shape: f32[32,128], index: 4, kind: input, shape index: {}]
  %s5 = inlined_call_operand.vmem [shape: f32[1,128], index: 5, kind: input, shape index: {}]
  %s6 = inlined_call_operand.hbm [shape: f32[32,32], index: 6, kind: input, shape index: {}]
  %s7 = inlined_call_operand.vmem [shape: f32[1,32], index: 7, kind: input, shape index: {}]
  %s8 = inlined_call_operand.vmem [shape: f32[32,16], index: 8, kind: input, shape index: {}]
  %s9 = inlined_call_operand.vmem [shape: f32[1,16], index: 9, kind: input, shape index: {}]
  %s10 = inlined_call_operand.hbm [shape: f32[8,2,16], index: 10, kind: output, shape index: {0}]
  %s11 = inlined_call_operand.hbm [shape: f32[2,32], index: 11, kind: output, shape index: {1}]
  %s12 = inlined_call_operand.hbm [shape: f32[2,32], index: 12, kind: output, shape index: {2}]
  %13 = xla_tuple %s10, %s11, %s12
  %s14 = sld [smem:[#allocation0]]
  $region85: #{tpu_custom_call.1} parent=0
    _
  %s16 = ssub.s32 1, %s14
  %s17 = scalar_select 0, %s16, %s14
  $region1: #{tpu_custom_call.1} parent=0
    #allocation2 [shape = 'u8[1024]{0}', space=vmem, size = 0x400, scoped, tag = 'input window, operand 2, single buffered']
    #allocation3 [shape = 's32[1]{0}', space=sflag, size = 0x4, scoped, tag = 'scoped memory for tpu_custom_call.1']
    #allocation4 [shape = 's32[1]{0}', space=sflag, size = 0x4, scoped, tag = 'scoped memory for tpu_custom_call.1']
    #allocation5 [shape = 'u8[8192]{0}', space=vmem, size = 0x2000, scoped, tag = 'input window, operand 3, single buffered']
    #allocation6 [shape = 's32[1]{0}', space=sflag, size = 0x4, scoped, tag = 'scoped memory for tpu_custom_call.1']
    #allocation7 [shape = 'u8[16384]{0}', space=vmem, size = 0x4000, scoped, tag = 'input window, operand 6, single buffered']
    #allocation8 [shape = 'u8[8192]{0}', space=vmem, size = 0x2000, scoped, tag = 'output window, operand 0, single buffered']
    #allocation9 [shape = 'u8[1024]{0}', space=vmem, size = 0x400, scoped, tag = 'output window, operand 1, single buffered']
    #allocation10 [shape = 's32[1]{0}', space=sflag, size = 0x4, scoped, tag = 'scoped memory for tpu_custom_call.1']
    #allocation11 [shape = 'u8[1024]{0}', space=vmem, size = 0x400, scoped, tag = 'output window, operand 2, single buffered']
    %18 = vsyncpa [#allocation3], 0
    %19 = vsyncpa [#allocation6], 0
    %20 = vsyncpa [#allocation4], 0
    %21 = vsyncpa [#allocation10], 0
    // Predicated region
    $region2: #{tpu_custom_call.1} parent=1 // pred_check
      _
    $region3: #{tpu_custom_call.1} parent=1 // pred_check_branch
      %23 = sbr.rel (0) target = $region5
    $region4: #{tpu_custom_call.1} parent=1 // pred_region
      _
    $region5: #{tpu_custom_call.1} parent=1 // pred_fallthru
      _
    // Predicated region
    $region6: #{tpu_custom_call.1} parent=1 // pred_check
      _
    $region7: #{tpu_custom_call.1} parent=1 // pred_check_branch
      %25 = sbr.rel (0) target = $region9
    $region8: #{tpu_custom_call.1} parent=1 // pred_region
      _
    $region9: #{tpu_custom_call.1} parent=1 // pred_fallthru
      _
    // Predicated region
    $region10: #{tpu_custom_call.1} parent=1 // pred_check
      _
    $region11: #{tpu_custom_call.1} parent=1 // pred_check_branch
      %27 = sbr.rel (0) target = $region13
    $region12: #{tpu_custom_call.1} parent=1 // pred_region
      %29 = vsyncadd [#allocation3], 0
      %s31 = sshll.u32 %s2, 4
      %s32 = int_to_ptr.hbm [resolvable:$true] %s31
      %s33 = sshll.u32 [#allocation2], 4
      %s34 = int_to_ptr.vmem [resolvable:$true] %s33
      %36 = dma.hbm_to_vmem [thread:$0]  %s32, 32, %s34, [#allocation3]
    $region13: #{tpu_custom_call.1} parent=1 // pred_fallthru
      _
    // Predicated region
    $region14: #{tpu_custom_call.1} parent=1 // pred_check
      _
    $region15: #{tpu_custom_call.1} parent=1 // pred_check_branch
      %38 = sbr.rel (0) target = $region17
    $region16: #{tpu_custom_call.1} parent=1 // pred_region
      %40 = vsyncadd [#allocation6], 0
      %s41 = sshll.u32 %s3, 4
      %s42 = int_to_ptr.hbm [resolvable:$true] %s41
      %s43 = sshll.u32 [#allocation5], 4
      %s44 = int_to_ptr.vmem [resolvable:$true] %s43
      %49 = dma.hbm_to_vmem [thread:$0]  %s42, 256, %s44, [#allocation6], 128, 128, 8
    $region17: #{tpu_custom_call.1} parent=1 // pred_fallthru
      _
    // Predicated region
    $region18: #{tpu_custom_call.1} parent=1 // pred_check
      _
    $region19: #{tpu_custom_call.1} parent=1 // pred_check_branch
      %51 = sbr.rel (0) target = $region21
    $region20: #{tpu_custom_call.1} parent=1 // pred_region
      _
    $region21: #{tpu_custom_call.1} parent=1 // pred_fallthru
      _
    // Predicated region
    $region22: #{tpu_custom_call.1} parent=1 // pred_check
      _
    $region23: #{tpu_custom_call.1} parent=1 // pred_check_branch
      %53 = sbr.rel (0) target = $region25
    $region24: #{tpu_custom_call.1} parent=1 // pred_region
      _
    $region25: #{tpu_custom_call.1} parent=1 // pred_fallthru
      _
    // Predicated region
    $region26: #{tpu_custom_call.1} parent=1 // pred_check
      _
    $region27: #{tpu_custom_call.1} parent=1 // pred_check_branch
      %55 = sbr.rel (0) target = $region29
    $region28: #{tpu_custom_call.1} parent=1 // pred_region
      %57 = vsyncadd [#allocation6], 0
      %s58 = sshll.u32 %s6, 4
      %s59 = int_to_ptr.hbm [resolvable:$true] %s58
      %s60 = sshll.u32 [#allocation7], 4
      %s61 = int_to_ptr.vmem [resolvable:$true] %s60
      %66 = dma.hbm_to_vmem [thread:$0]  %s59, 512, %s61, [#allocation6], 128, 128, 8
    $region29: #{tpu_custom_call.1} parent=1 // pred_fallthru
      _
    // Predicated region
    $region30: #{tpu_custom_call.1} parent=1 // pred_check
      _
    $region31: #{tpu_custom_call.1} parent=1 // pred_check_branch
      %68 = sbr.rel (0) target = $region33
    $region32: #{tpu_custom_call.1} parent=1 // pred_region
      _
    $region33: #{tpu_custom_call.1} parent=1 // pred_fallthru
      _
    // Predicated region
    $region34: #{tpu_custom_call.1} parent=1 // pred_check
      _
    $region35: #{tpu_custom_call.1} parent=1 // pred_check_branch
      %70 = sbr.rel (0) target = $region37
    $region36: #{tpu_custom_call.1} parent=1 // pred_region
      _
    $region37: #{tpu_custom_call.1} parent=1 // pred_fallthru
      _
    // Predicated region
    $region38: #{tpu_custom_call.1} parent=1 // pred_check
      _
    $region39: #{tpu_custom_call.1} parent=1 // pred_check_branch
      %72 = sbr.rel (0) target = $region41
    $region40: #{tpu_custom_call.1} parent=1 // pred_region
      _
    $region41: #{tpu_custom_call.1} parent=1 // pred_fallthru
      _
    // Predicated region
    $region42: #{tpu_custom_call.1} parent=1 // pred_check
      _
    $region43: #{tpu_custom_call.1} parent=1 // pred_check_branch
      %74 = sbr.rel (0) target = $region45
    $region44: #{tpu_custom_call.1} parent=1 // pred_region
      %76 = dma.done [#allocation3], 32
    $region45: #{tpu_custom_call.1} parent=1 // pred_fallthru
      _
    // Predicated region
    $region46: #{tpu_custom_call.1} parent=1 // pred_check
      _
    $region47: #{tpu_custom_call.1} parent=1 // pred_check_branch
      %78 = sbr.rel (0) target = $region49
    $region48: #{tpu_custom_call.1} parent=1 // pred_region
      %80 = dma.done [#allocation6], 256
    $region49: #{tpu_custom_call.1} parent=1 // pred_fallthru
      _
    // Predicated region
    $region50: #{tpu_custom_call.1} parent=1 // pred_check
      _
    $region51: #{tpu_custom_call.1} parent=1 // pred_check_branch
      %82 = sbr.rel (0) target = $region53
    $region52: #{tpu_custom_call.1} parent=1 // pred_region
      %84 = dma.done [#allocation6], 512
    $region53: #{tpu_custom_call.1} parent=1 // pred_fallthru
      _
    %v85 = vld [vmem:[%s1] sm:$0x3]
    %v86 = vld [vmem:[#allocation2] sm:$0x3]
    loop: start=0, step=1, limit=8
    $region54: #{tpu_custom_call.1} parent=1 // loop_pre_header
      _
    $region55: #{tpu_custom_call.1} parent=1 // loop_header
      %s88 = sphi 0, %s92
      %p89 = scmp.ge.s32.totalorder %s88, 8
      %v93 = vphi %v85, %v208
      %v94 = vphi %v86, %v309
    $region56: #{tpu_custom_call.1} parent=1 // loop_header_branch
      %91 = sbr.rel (%p89) target = $region60
    $region57: #{tpu_custom_call.1} parent=1 // loop_body
      %s95 = smul.u32 %s88, 2
      %s96 = scalar_lea.vmem %s0, %s95
      %v97 = vld [vmem:[%s96] sm:$0x3]
      %v98 = vld [vmem:[#allocation5] sm:$0xff]
      %v99 = vld [vmem:[#allocation5 + $0x8] sm:$0xff]
      %v100 = vld [vmem:[%s4] sm:$0xff]
      %v101 = vld [vmem:[%s4 + $0x8] sm:$0xff]
      %v102 = vld [vmem:[%s4 + $0x10] sm:$0xff]
      %v103 = vld [vmem:[%s4 + $0x18] sm:$0xff]
      %vm104 = vcmask 261120
      %v106 = vsel %vm104, %v93, 0
      %108 = vmatpush.msra.mxu0 0.0
      %109 = vmatpush.msra.mxu0 0.0
      %110 = vmatpush.msra.mxu0 0.0
      %111 = vmatpush.msra.mxu0 0.0
      %112 = vmatpush.msra.mxu0 0.0
      %113 = vmatpush.msra.mxu0 0.0
      %114 = vmatpush.msra.mxu0 0.0
      %115 = vmatpush.msra.mxu0 0.0
      %116 = vmatpush.msra.mxu0 0.0
      %117 = vmatpush.msra.mxu0 0.0
      %118 = vmatpush.msra.mxu0 0.0
      %119 = vmatpush.msra.mxu0 0.0
      %120 = vmatpush.msra.mxu0 %v103
      %121 = vmatpush.msra.mxu0 %v102
      %122 = vmatpush.msra.mxu0 %v101
      %123 = vmatpush.msra.mxu0 %v100
      %124 = vmatmul.f32.gmra.mxu0 %v106
      %v125 = vpop.f32.mrf.mxu0
      %v126 = vadd.f32 0.0, %v125
      %127 = vdwg.mxu0
      %vm128 = vcmask 130048
      %v130 = vsel %vm128, %v97, 0
      %132 = vmatpush.msra.mxu0 0.0
      %133 = vmatpush.msra.mxu0 0.0
      %134 = vmatpush.msra.mxu0 0.0
      %135 = vmatpush.msra.mxu0 0.0
      %136 = vmatpush.msra.mxu0 0.0
      %137 = vmatpush.msra.mxu0 0.0
      %138 = vmatpush.msra.mxu0 0.0
      %139 = vmatpush.msra.mxu0 0.0
      %140 = vmatpush.msra.mxu0 0.0
      %141 = vmatpush.msra.mxu0 0.0
      %142 = vmatpush.msra.mxu0 0.0
      %143 = vmatpush.msra.mxu0 0.0
      %144 = vmatpush.msra.mxu0 0.0
      %145 = vmatpush.msra.mxu0 0.0
      %146 = vmatpush.msra.mxu0 %v99
      %147 = vmatpush.msra.mxu0 %v98
      %148 = vmatmul.f32.gmra.mxu0 %v130
      %v149 = vpop.f32.mrf.mxu0
      %v150 = vadd.f32 %v126, %v149
      %151 = vdwg.mxu0
      %v152 = vld [vmem:[%s5] sm:$0x1]
      %v154 = vperm.slane %v152, 0
      %v156 = vadd.f32 %v150, %v154
      %v157 = vxor.u32 %v156, 2147483648
      %v158 = vmul.f32 %v157, 1.442695
      %v159 = vpow.pop %v158
      %v160 = vadd.f32 %v159, 1.0
      %v161 = vrcp.pop %v160
      %v162 = vmul.f32 %v160, %v161
      %v163 = vsub.f32 1.0, %v162
      %v164 = vmul.f32 %v161, %v163
      %v165 = vadd.f32 %v161, %v164
      %vm166 = vweird.f32 %v160
      %vm167 = vweird.f32 %v161
      %vm168 = vmor %vm166, %vm167
      %v169 = vsel %vm168, %v161, %v165
      %v170 = vand.u32 2147483647, %v160
      %vm171 = vcmp.eq.f32.partialorder %v170, 8.507059e+37
      %v172 = vand.u32 %v160, 2147483648
      %v173 = vor.u32 1.1754944e-38, %v172
      %v174 = vsel %vm171, %v173, %v169
      %v175 = vmul.f32 1.0, %v174
      %v176 = vtanh.pop %v156
      %178 = vrot.lane.b32.xlu0 %v94, 32
      %v179 = vpop.permute.xlu0 %178
      %v181 = vmul.f32 %v175, %v179
      %183 = vrot.lane.b32.xlu0 %v176, 64
      %v184 = vpop.permute.xlu0 %183
      %v186 = vmul.f32 %v175, %v184
      %188 = vrot.lane.b32.xlu0 %v186, 32
      %v189 = vpop.permute.xlu0 %188
      %v191 = vadd.f32 %v181, %v189
      %v192 = vtanh.pop %v191
      %194 = vrot.lane.b32.xlu0 %v192, 64
      %v195 = vpop.permute.xlu0 %194
      %v197 = vmul.f32 %v175, %v195
      %v198 = vld [vmem:[#allocation7] sm:$0xff]
      %v199 = vld [vmem:[#allocation7 + $0x8] sm:$0xff]
      %v200 = vld [vmem:[#allocation7 + $0x10] sm:$0xff]
      %v201 = vld [vmem:[#allocation7 + $0x18] sm:$0xff]
      %v202 = vld [vmem:[%s7] sm:$0x1]
      %v204 = vperm.slane %v202, 0
      %207 = vrot.lane.b32.xlu0 %v197, 32
      %v208 = vpop.permute.xlu0 %207
      %v209 = vsel %vm104, %v208, 0
      %211 = vmatpush.msra.mxu0 0.0
      %212 = vmatpush.msra.mxu0 0.0
      %213 = vmatpush.msra.mxu0 0.0
      %214 = vmatpush.msra.mxu0 0.0
      %215 = vmatpush.msra.mxu0 0.0
      %216 = vmatpush.msra.mxu0 0.0
      %217 = vmatpush.msra.mxu0 0.0
      %218 = vmatpush.msra.mxu0 0.0
      %219 = vmatpush.msra.mxu0 0.0
      %220 = vmatpush.msra.mxu0 0.0
      %221 = vmatpush.msra.mxu0 0.0
      %222 = vmatpush.msra.mxu0 0.0
      %223 = vmatpush.msra.mxu0 %v201
      %224 = vmatpush.msra.mxu0 %v200
      %225 = vmatpush.msra.mxu0 %v199
      %226 = vmatpush.msra.mxu0 %v198
      %227 = vmatmul.f32.gmra.mxu0 %v209
      %v228 = vpop.f32.mrf.mxu0
      %v229 = vadd.f32 %v204, %v228
      %230 = vdwg.mxu0
      %v231 = vmul.f32 %v229, 0.5
      %v232 = vmul.f32 %v229, 0.70710677
      %v233 = vand.u32 2147483647, %v232
      %v234 = vmul.f32 %v233, 0.3275911
      %v235 = vadd.f32 %v234, 1.0
      %v236 = vrcp.pop %v235
      %v237 = vmul.f32 %v235, %v236
      %v238 = vsub.f32 1.0, %v237
      %v239 = vmul.f32 %v236, %v238
      %v240 = vadd.f32 %v236, %v239
      %vm241 = vweird.f32 %v235
      %vm242 = vweird.f32 %v236
      %vm243 = vmor %vm241, %vm242
      %v244 = vsel %vm243, %v236, %v240
      %v245 = vand.u32 2147483647, %v235
      %vm246 = vcmp.eq.f32.partialorder %v245, 8.507059e+37
      %v247 = vand.u32 %v235, 2147483648
      %v248 = vor.u32 1.1754944e-38, %v247
      %v249 = vsel %vm246, %v248, %v244
      %v250 = vmul.f32 1.0, %v249
      %v251 = vmul.f32 %v250, 1.0614054
      %v252 = vadd.f32 %v251, -1.4531521
      %v253 = vmul.f32 %v252, %v250
      %v254 = vadd.f32 %v253, 1.4214138
      %v255 = vmul.f32 %v254, %v250
      %v256 = vadd.f32 %v255, -0.28449672
      %v257 = vmul.f32 %v256, %v250
      %v258 = vadd.f32 %v257, 0.2548296
      %v259 = vmul.f32 %v258, %v250
      %v260 = vsub.f32 0.0, %v233
      %v261 = vmul.f32 %v260, %v233
      %v262 = vmul.f32 %v261, 1.442695
      %v263 = vpow.pop %v262
      %v264 = vmul.f32 %v259, %v263
      %v265 = vsub.f32 1.0, %v264
      %vm266 = vcmp.ge.f32.partialorder %v232, 0.0
      %v267 = vsub.f32 0.0, %v265
      %v268 = vsel %vm266, %v265, %v267
      %v269 = vadd.f32 %v268, 1.0
      %v270 = vmul.f32 %v231, %v269
      %v271 = vld [vmem:[%s8] sm:$0xff]
      %v272 = vld [vmem:[%s8 + $0x8] sm:$0xff]
      %v273 = vld [vmem:[%s8 + $0x10] sm:$0xff]
      %v274 = vld [vmem:[%s8 + $0x18] sm:$0xff]
      %v275 = vld [vmem:[%s9] sm:$0x1]
      %v277 = vperm.slane %v275, 0
      %v280 = vsel %vm104, %v270, 0
      %282 = vmatpush.msra.mxu0 0.0
      %283 = vmatpush.msra.mxu0 0.0
      %284 = vmatpush.msra.mxu0 0.0
      %285 = vmatpush.msra.mxu0 0.0
      %286 = vmatpush.msra.mxu0 0.0
      %287 = vmatpush.msra.mxu0 0.0
      %288 = vmatpush.msra.mxu0 0.0
      %289 = vmatpush.msra.mxu0 0.0
      %290 = vmatpush.msra.mxu0 0.0
      %291 = vmatpush.msra.mxu0 0.0
      %292 = vmatpush.msra.mxu0 0.0
      %293 = vmatpush.msra.mxu0 0.0
      %294 = vmatpush.msra.mxu0 %v274
      %295 = vmatpush.msra.mxu0 %v273
      %296 = vmatpush.msra.mxu0 %v272
      %297 = vmatpush.msra.mxu0 %v271
      %298 = vmatmul.f32.gmra.mxu0 %v280
      %v299 = vpop.f32.mrf.mxu0
      %v300 = vadd.f32 %v277, %v299
      %301 = vdwg.mxu0
      %v302 = vadd.f32 %v300, %v97
      %s303 = scalar_lea.vmem [#allocation8], %s95
      %vm304 = vcmask 123904
      %305 = vst.msk [vmem:[%s303] sm:$0x3] %vm304, %v302
      %308 = vrot.lane.b32.xlu0 %v191, 96
      %v309 = vpop.permute.xlu0 %308
    $region58: #{tpu_custom_call.1} parent=1 // loop_footer
      %s92 = sadd.s32 1, %s88
    $region59: #{tpu_custom_call.1} parent=1 // loop_footer_branch
      %87 = sbr.rel target = $region55
    $region60: #{tpu_custom_call.1} parent=1 // loop_exit
      _
    %vm311 = vcmask 254976
    %312 = vst.msk [vmem:[#allocation9] sm:$0x3] %vm311, %v93
    %313 = vst.msk [vmem:[#allocation11] sm:$0x3] %vm311, %v94
    // Predicated region
    $region61: #{tpu_custom_call.1} parent=1 // pred_check
      _
    $region62: #{tpu_custom_call.1} parent=1 // pred_check_branch
      %315 = sbr.rel (0) target = $region64
    $region63: #{tpu_custom_call.1} parent=1 // pred_region
      %317 = vsyncadd [#allocation4], 0
      %s318 = sshll.u32 [#allocation8], 4
      %s319 = int_to_ptr.vmem [resolvable:$true] %s318
      %s320 = sshll.u32 %s10, 4
      %s321 = int_to_ptr.hbm [resolvable:$true] %s320
      %326 = dma.vmem_to_hbm [thread:$0]  %s319, 256, %s321, [#allocation4], 32, 32, 2
    $region64: #{tpu_custom_call.1} parent=1 // pred_fallthru
      _
    // Predicated region
    $region65: #{tpu_custom_call.1} parent=1 // pred_check
      _
    $region66: #{tpu_custom_call.1} parent=1 // pred_check_branch
      %328 = sbr.rel (0) target = $region68
    $region67: #{tpu_custom_call.1} parent=1 // pred_region
      %330 = vsyncadd [#allocation10], 0
      %s332 = sshll.u32 [#allocation9], 4
      %s333 = int_to_ptr.vmem [resolvable:$true] %s332
      %s334 = sshll.u32 %s11, 4
      %s335 = int_to_ptr.hbm [resolvable:$true] %s334
      %337 = dma.vmem_to_hbm [thread:$0]  %s333, 32, %s335, [#allocation10]
    $region68: #{tpu_custom_call.1} parent=1 // pred_fallthru
      _
    // Predicated region
    $region69: #{tpu_custom_call.1} parent=1 // pred_check
      _
    $region70: #{tpu_custom_call.1} parent=1 // pred_check_branch
      %339 = sbr.rel (0) target = $region72
    $region71: #{tpu_custom_call.1} parent=1 // pred_region
      %341 = vsyncadd [#allocation10], 0
      %s343 = sshll.u32 [#allocation11], 4
      %s344 = int_to_ptr.vmem [resolvable:$true] %s343
      %s345 = sshll.u32 %s12, 4
      %s346 = int_to_ptr.hbm [resolvable:$true] %s345
      %348 = dma.vmem_to_hbm [thread:$0]  %s344, 32, %s346, [#allocation10]
    $region72: #{tpu_custom_call.1} parent=1 // pred_fallthru
      _
    // Predicated region
    $region73: #{tpu_custom_call.1} parent=1 // pred_check
      _
    $region74: #{tpu_custom_call.1} parent=1 // pred_check_branch
      %350 = sbr.rel (0) target = $region76
    $region75: #{tpu_custom_call.1} parent=1 // pred_region
      %352 = dma.done [#allocation4], 256
    $region76: #{tpu_custom_call.1} parent=1 // pred_fallthru
      _
    // Predicated region
    $region77: #{tpu_custom_call.1} parent=1 // pred_check
      _
    $region78: #{tpu_custom_call.1} parent=1 // pred_check_branch
      %354 = sbr.rel (0) target = $region80
    $region79: #{tpu_custom_call.1} parent=1 // pred_region
      %356 = dma.done [#allocation10], 32
    $region80: #{tpu_custom_call.1} parent=1 // pred_fallthru
      _
    // Predicated region
    $region81: #{tpu_custom_call.1} parent=1 // pred_check
      _
    $region82: #{tpu_custom_call.1} parent=1 // pred_check_branch
      %358 = sbr.rel (0) target = $region84
    $region83: #{tpu_custom_call.1} parent=1 // pred_region
      %360 = dma.done [#allocation10], 32
    $region84: #{tpu_custom_call.1} parent=1 // pred_fallthru
      _
    %361 = vsyncpa [#allocation3], 1
    %362 = vsyncpa [#allocation6], 1
    %363 = vsyncpa [#allocation4], 1
    %364 = vsyncpa [#allocation10], 1

</llo_original>
